<compile_context>
chip_gen: v5e
topology: v5e:2x2
jax: 0.10.0
libtpu: 0.0.40
codegen_flags: <defaults>
</compile_context>

<pallas_src>
import functools

import jax
import jax.numpy as jnp
from jax.experimental import pallas as pl
from jax.experimental.pallas import tpu as pltpu


def _round_up(x, m):
    return (x + m - 1) // m * m


def _part_update_embedding_kernel(idx_ref, emb_update_ref, emb_fixed_ref, out_ref,
                                  *, update_index):
    # idx_ref:        [T, 1] int32 (tile of token indices)
    # emb_update_ref: [U, D] table, whole array resident in VMEM (single copy)
    # emb_fixed_ref:  [V, D] table, whole array resident in VMEM (single copy)
    # out_ref:        [T, D]
    idx = idx_ref[...]                                            # [T, 1] int32
    T = idx.shape[0]
    U = emb_update_ref.shape[0]
    V = emb_fixed_ref.shape[0]
    cdt = emb_fixed_ref.dtype                                     # compute dtype for one-hots

    is_update = idx < update_index                                # [T, 1] bool

    # --- update-table path: clamp + one-hot, mask folded into the compare ---
    idx_clamped = jnp.clip(idx, 0, update_index - 1)              # [T, 1]
    iota_u = jax.lax.broadcasted_iota(jnp.int32, (T, U), 1)       # [T, U]
    onehot_upd = ((idx_clamped == iota_u) & is_update).astype(cdt)
    r_update = jnp.dot(onehot_upd, emb_update_ref[...],
                       preferred_element_type=jnp.float32)        # [T, D] f32

    # --- fixed-table path: one-hot, complementary mask folded in ---
    iota_v = jax.lax.broadcasted_iota(jnp.int32, (T, V), 1)       # [T, V]
    onehot_fixed = ((idx == iota_v) & jnp.logical_not(is_update)).astype(cdt)
    r_fixed = jnp.dot(onehot_fixed, emb_fixed_ref[...],
                      preferred_element_type=jnp.float32)         # [T, D] f32

    # Masks are disjoint, so a plain add replaces the mask/blend of the module.
    out_ref[...] = (r_update + r_fixed).astype(out_ref.dtype)


def part_update_embedding(inp, emb_update, emb_fixed, update_index, *, tile=256):
    """inp: [B, S] int; emb_update: [U, D]; emb_fixed: [V, D] -> [B, S, D]."""
    assert inp.ndim == 2
    B, S = inp.shape
    U, D = emb_update.shape
    V, D2 = emb_fixed.shape
    assert D == D2

    N = B * S
    # Use a large token tile for big inputs, but never (much) larger than the
    # (sublane-aligned) token count; keep it a multiple of 8.
    tile = max(8, min(int(tile), _round_up(N, 8)))
    tile = _round_up(tile, 8)
    N_pad = _round_up(N, tile)

    idx_flat = inp.reshape(N).astype(jnp.int32)
    if N_pad != N:
        idx_flat = jnp.pad(idx_flat, (0, N_pad - N))              # pad tokens -> index 0
    idx_flat = idx_flat.reshape(N_pad, 1)

    out_dtype = emb_fixed.dtype
    itemsize = jnp.dtype(out_dtype).itemsize

    # Rough VMEM footprint: single-buffered tables, double-buffered idx/out
    # blocks, one-hot intermediates and f32 matmul results.
    est_bytes = ((U + V) * D * itemsize
                 + 2 * tile * 4
                 + 2 * tile * D * itemsize
                 + tile * (U + V) * itemsize
                 + 2 * tile * D * 4)
    vmem_limit = int(min(128 * 1024 * 1024, max(32 * 1024 * 1024, 2 * est_bytes)))

    kernel = functools.partial(_part_update_embedding_kernel,
                               update_index=int(update_index))

    out_flat = pl.pallas_call(
        kernel,
        out_shape=jax.ShapeDtypeStruct((N_pad, D), out_dtype),
        grid_spec=pltpu.PrefetchScalarGridSpec(
            num_scalar_prefetch=0,
            grid=(N_pad // tile,),
            in_specs=[
                # per-tile token indices (pipelined over the token grid)
                pl.BlockSpec((tile, 1), lambda t: (t, 0)),
                # constant tables: whole array in VMEM, single copy, no
                # per-step double-buffering.
                pl.BlockSpec(memory_space=pltpu.MemorySpace.VMEM),
                pl.BlockSpec(memory_space=pltpu.MemorySpace.VMEM),
            ],
            out_specs=pl.BlockSpec((tile, D), lambda t: (t, 0)),
        ),
        compiler_params=pltpu.CompilerParams(
            dimension_semantics=("parallel",),
            vmem_limit_bytes=vmem_limit),
    )(idx_flat, emb_update, emb_fixed)

    return out_flat[:N].reshape(B, S, D)


def _reference(inp, emb_update, emb_fixed, update_index):
    r_update = emb_update[jnp.clip(inp, 0, update_index - 1)]
    r_fixed = emb_fixed[inp]
    mask = (inp < update_index).astype(jnp.float32)[..., None]
    return r_update * mask + r_fixed * (1.0 - mask)


if __name__ == "__main__":
    # Small, deterministic config consistent with the module:
    #   vocab V=16, update_index U=6, embedding_dim D=32, batch B=2, seq S=8
    B, S, D = 2, 8, 32
    V, U = 16, 6

    key = jax.random.PRNGKey(0)
    k_upd, k_fix, k_idx = jax.random.split(key, 3)

    emb_update = jax.random.normal(k_upd, (U, D), dtype=jnp.float32)
    emb_fixed = jax.random.normal(k_fix, (V, D), dtype=jnp.float32)
    inp = jax.random.randint(k_idx, (B, S), minval=0, maxval=V, dtype=jnp.int32)

    out = part_update_embedding(inp, emb_update, emb_fixed, U)
    out = jax.block_until_ready(out)

    ref = _reference(inp, emb_update, emb_fixed, U)
    assert out.shape == (B, S, D)
    assert jnp.allclose(out, ref, atol=1e-5, rtol=1e-5), "mismatch vs reference"

    print("KERNEL_OK")
</pallas_src>

<mosaic_0001>
module attributes {stable_mosaic.version = 11 : i64} {
  func.func @_part_update_embedding_kernel(%arg0: i32, %arg1: memref<16x1xi32, #tpu.memory_space<vmem>>, %arg2: memref<6x32xf32, #tpu.memory_space<vmem>>, %arg3: memref<16x32xf32, #tpu.memory_space<vmem>>, %arg4: memref<16x32xf32, #tpu.memory_space<vmem>>) attributes {dimension_semantics = [#tpu.dimension_semantics<parallel>], iteration_bounds = array<i64: 1>, scalar_prefetch = 0 : i64, scratch_operands = 0 : i64, tpu.core_type = #tpu.core_type<tc>, window_params = [{transform_indices = @transform_0, window_bounds = array<i64: 16, 1>}, {pipeline_mode = #tpu.pipeline_mode<synchronous>, transform_indices = @transform_1, window_bounds = array<i64: 6, 32>}, {pipeline_mode = #tpu.pipeline_mode<synchronous>, transform_indices = @transform_2, window_bounds = array<i64: 16, 32>}, {transform_indices = @transform_3, window_bounds = array<i64: 16, 32>}]} {
    %c0 = arith.constant 0 : index
    %c0_0 = arith.constant 0 : index
    %0 = vector.load %arg1[%c0, %c0_0] : memref<16x1xi32, #tpu.memory_space<vmem>>, vector<16x1xi32>
    %c6_i32 = arith.constant 6 : i32
    %1 = vector.broadcast %c6_i32 : i32 to vector<16x1xi32>
    %2 = arith.cmpi slt, %0, %1 : vector<16x1xi32>
    %c0_i32 = arith.constant 0 : i32
    %c5_i32 = arith.constant 5 : i32
    %3 = vector.broadcast %c0_i32 : i32 to vector<16x1xi32>
    %4 = arith.maxsi %3, %0 : vector<16x1xi32>
    %5 = vector.broadcast %c5_i32 : i32 to vector<16x1xi32>
    %6 = arith.minsi %5, %4 : vector<16x1xi32>
    %7 = tpu.iota {dimensions = array<i32: 1>} : vector<16x6xi32>
    %8 = vector.broadcast %6 : vector<16x1xi32> to vector<16x6xi32>
    %9 = arith.cmpi eq, %8, %7 : vector<16x6xi32>
    %10 = vector.broadcast %2 : vector<16x1xi1> to vector<16x6xi1>
    %11 = arith.andi %9, %10 : vector<16x6xi1>
    %12 = arith.extui %11 : vector<16x6xi1> to vector<16x6xi32>
    %13 = arith.sitofp %12 : vector<16x6xi32> to vector<16x6xf32>
    %c0_1 = arith.constant 0 : index
    %c0_2 = arith.constant 0 : index
    %14 = vector.load %arg2[%c0_1, %c0_2] : memref<6x32xf32, #tpu.memory_space<vmem>>, vector<6x32xf32>
    %cst = arith.constant dense<0.000000e+00> : vector<16x32xf32>
    %15 = tpu.matmul %13, %14, %cst {dimension_numbers = #tpu.dot_dimension_numbers<[1], [0], [0], [1], [0, 0, 1, 1], [], []>} : vector<16x6xf32>, vector<6x32xf32>, vector<16x32xf32> -> vector<16x32xf32>
    %16 = tpu.iota {dimensions = array<i32: 1>} : vector<16x16xi32>
    %17 = vector.broadcast %0 : vector<16x1xi32> to vector<16x16xi32>
    %18 = arith.cmpi eq, %17, %16 : vector<16x16xi32>
    %cst_3 = arith.constant dense<true> : vector<16x1xi1>
    %19 = arith.xori %2, %cst_3 : vector<16x1xi1>
    %20 = vector.broadcast %19 : vector<16x1xi1> to vector<16x16xi1>
    %21 = arith.andi %18, %20 : vector<16x16xi1>
    %22 = arith.extui %21 : vector<16x16xi1> to vector<16x16xi32>
    %23 = arith.sitofp %22 : vector<16x16xi32> to vector<16x16xf32>
    %c0_4 = arith.constant 0 : index
    %c0_5 = arith.constant 0 : index
    %24 = vector.load %arg3[%c0_4, %c0_5] : memref<16x32xf32, #tpu.memory_space<vmem>>, vector<16x32xf32>
    %cst_6 = arith.constant dense<0.000000e+00> : vector<16x32xf32>
    %25 = tpu.matmul %23, %24, %cst_6 {dimension_numbers = #tpu.dot_dimension_numbers<[1], [0], [0], [1], [0, 0, 1, 1], [], []>} : vector<16x16xf32>, vector<16x32xf32>, vector<16x32xf32> -> vector<16x32xf32>
    %26 = arith.addf %15, %25 : vector<16x32xf32>
    %c0_7 = arith.constant 0 : index
    %c0_8 = arith.constant 0 : index
    %27 = vector.load %arg4[%c0_7, %c0_8] : memref<16x32xf32, #tpu.memory_space<vmem>>, vector<16x32xf32>
    tpu.vector_store %arg4[%c0_7, %c0_8], %26 {strides = array<i32>} : memref<16x32xf32, #tpu.memory_space<vmem>>, vector<16x32xf32>,
    return
  }
  func.func @transform_0(%arg0: i32) -> (i32, i32) {
    %c0_i32 = arith.constant 0 : i32
    %c0_i32_0 = arith.constant 0 : i32
    return %arg0, %c0_i32 : i32, i32
  }
  func.func @transform_1(%arg0: i32) -> (i32, i32) {
    %c0_i32 = arith.constant 0 : i32
    %c0_i32_0 = arith.constant 0 : i32
    %c0_i32_1 = arith.constant 0 : i32
    return %c0_i32, %c0_i32_0 : i32, i32
  }
  func.func @transform_2(%arg0: i32) -> (i32, i32) {
    %c0_i32 = arith.constant 0 : i32
    %c0_i32_0 = arith.constant 0 : i32
    %c0_i32_1 = arith.constant 0 : i32
    return %c0_i32, %c0_i32_0 : i32, i32
  }
  func.func @transform_3(%arg0: i32) -> (i32, i32) {
    %c0_i32 = arith.constant 0 : i32
    %c0_i32_0 = arith.constant 0 : i32
    return %arg0, %c0_i32 : i32, i32
  }
}

</mosaic_0001>

<llo_original>
// kernel: tpu_custom_call.1
$region0: #{tpu_custom_call.1}
  #allocation0 [shape = 'u32[]', space=smem, size = 0x4, offset = 0x4, fixed_abs, tag = 'smem constant byte address 0x4 - core index']
  #allocation1 [shape = 'u32[72,128]{1,0:T(1,128)}', space=vmem, size = 0x9000, scoped, tag = 'internal scratch']
  %s0 = inlined_call_operand.vmem [shape: s32[16,1], index: 0, kind: input, shape index: {}]
  %s1 = inlined_call_operand.hbm [shape: f32[6,32], index: 1, kind: input, shape index: {}]
  %s2 = inlined_call_operand.vmem [shape: f32[16,32], index: 2, kind: input, shape index: {}]
  %s3 = inlined_call_operand.hbm [shape: f32[16,32], index: 3, kind: output, shape index: {}]
  %s4 = sld [smem:[#allocation0]]
  $region26: #{tpu_custom_call.1} parent=0
    _
  %s6 = ssub.s32 1, %s4
  %s7 = scalar_select 0, %s6, %s4
  $region1: #{tpu_custom_call.1} parent=0
    #allocation2 [shape = 'u8[4096]{0}', space=vmem, size = 0x1000, scoped, tag = 'input window, operand 1, single buffered']
    #allocation3 [shape = 's32[1]{0}', space=sflag, size = 0x4, scoped, tag = 'scoped memory for tpu_custom_call.1']
    #allocation4 [shape = 's32[1]{0}', space=sflag, size = 0x4, scoped, tag = 'scoped memory for tpu_custom_call.1']
    #allocation5 [shape = 'u8[8192]{0}', space=vmem, size = 0x2000, scoped, tag = 'output window, operand 0, single buffered']
    %8 = vsyncpa [#allocation3], 0
    %9 = vsyncpa [#allocation4], 0
    // Predicated region
    $region2: #{tpu_custom_call.1} parent=1 // pred_check
      _
    $region3: #{tpu_custom_call.1} parent=1 // pred_check_branch
      %11 = sbr.rel (0) target = $region5
    $region4: #{tpu_custom_call.1} parent=1 // pred_region
      _
    $region5: #{tpu_custom_call.1} parent=1 // pred_fallthru
      _
    // Predicated region
    $region6: #{tpu_custom_call.1} parent=1 // pred_check
      _
    $region7: #{tpu_custom_call.1} parent=1 // pred_check_branch
      %13 = sbr.rel (0) target = $region9
    $region8: #{tpu_custom_call.1} parent=1 // pred_region
      %15 = vsyncadd [#allocation3], 0
      %s17 = sshll.u32 %s1, 4
      %s18 = int_to_ptr.hbm [resolvable:$true] %s17
      %s19 = sshll.u32 [#allocation2], 4
      %s20 = int_to_ptr.vmem [resolvable:$true] %s19
      %22 = dma.hbm_to_vmem [thread:$0]  %s18, 128, %s20, [#allocation3]
    $region9: #{tpu_custom_call.1} parent=1 // pred_fallthru
      _
    // Predicated region
    $region10: #{tpu_custom_call.1} parent=1 // pred_check
      _
    $region11: #{tpu_custom_call.1} parent=1 // pred_check_branch
      %24 = sbr.rel (0) target = $region13
    $region12: #{tpu_custom_call.1} parent=1 // pred_region
      _
    $region13: #{tpu_custom_call.1} parent=1 // pred_fallthru
      _
    // Predicated region
    $region14: #{tpu_custom_call.1} parent=1 // pred_check
      _
    $region15: #{tpu_custom_call.1} parent=1 // pred_check_branch
      %26 = sbr.rel (0) target = $region17
    $region16: #{tpu_custom_call.1} parent=1 // pred_region
      %28 = dma.done [#allocation3], 128
    $region17: #{tpu_custom_call.1} parent=1 // pred_fallthru
      _
    %v29 = vld [vmem:[%s0] sm:$0xff]
    %v30 = vld [vmem:[%s0 + $0x8] sm:$0xff]
    %vm31 = vcmp.lt.s32.totalorder %v29, 6
    %vm32 = vcmp.lt.s32.totalorder %v30, 6
    %vm33 = vcmp.gt.s32.totalorder %v29, 0
    %v34 = vsel %vm33, %v29, 0
    %vm35 = vcmp.gt.s32.totalorder %v30, 0
    %v36 = vsel %vm35, %v30, 0
    %vm37 = vcmp.lt.s32.totalorder %v34, 5
    %v38 = vsel %vm37, %v34, 5
    %vm39 = vcmp.lt.s32.totalorder %v36, 5
    %v40 = vsel %vm39, %v36, 5
    %v41 = vlaneseq
    %v42 = vand.u32 %v41, 127
    %43 = vset.pattern.permute.xlu0 0
    %44 = vperm.xlu0 %43, %v38
    %v45 = vpop.permute.xlu0 %44
    %46 = vset.pattern.permute.xlu0 0
    %47 = vperm.xlu0 %46, %v40
    %v48 = vpop.permute.xlu0 %47
    %vm49 = vcmp.eq.s32.totalorder %v45, %v42
    %vm50 = vcmp.eq.s32.totalorder %v48, %v42
    %v51 = vsel %vm31, 1, 0
    %v52 = vsel %vm32, 1, 0
    %53 = vset.pattern.permute.xlu0 0
    %54 = vperm.xlu0 %53, %v51
    %v55 = vpop.permute.xlu0 %54
    %56 = vset.pattern.permute.xlu0 0
    %57 = vperm.xlu0 %56, %v52
    %v58 = vpop.permute.xlu0 %57
    %vm59 = vcmp.eq.s32.totalorder %v55, 1
    %vm60 = vcmp.eq.s32.totalorder %v58, 1
    %vm61 = vmand %vm49, %vm59
    %vm62 = vmand %vm50, %vm60
    %v63 = vsel %vm61, 1, 0
    %v64 = vsel %vm62, 1, 0
    %v65 = vcvt.s32.f32 %v63
    %v66 = vcvt.s32.f32 %v64
    %v67 = vld [vmem:[#allocation2] sm:$0x3f]
    %68 = vset.pattern.permute.xlu0 0
    %69 = vperm.xlu0 %68, %v29
    %v70 = vpop.permute.xlu0 %69
    %71 = vset.pattern.permute.xlu0 0
    %72 = vperm.xlu0 %71, %v30
    %v73 = vpop.permute.xlu0 %72
    %vm74 = vcmp.eq.s32.totalorder %v70, %v42
    %vm75 = vcmp.eq.s32.totalorder %v73, %v42
    %vm76 = vmxor %vm31, 1
    %vm77 = vmxor %vm32, 1
    %v78 = vsel %vm76, 1, 0
    %v79 = vsel %vm77, 1, 0
    %80 = vset.pattern.permute.xlu0 0
    %81 = vperm.xlu0 %80, %v78
    %v82 = vpop.permute.xlu0 %81
    %83 = vset.pattern.permute.xlu0 0
    %84 = vperm.xlu0 %83, %v79
    %v85 = vpop.permute.xlu0 %84
    %vm86 = vcmp.eq.s32.totalorder %v82, 1
    %vm87 = vcmp.eq.s32.totalorder %v85, 1
    %vm88 = vmand %vm74, %vm86
    %vm89 = vmand %vm75, %vm87
    %v90 = vsel %vm88, 1, 0
    %v91 = vsel %vm89, 1, 0
    %v92 = vcvt.s32.f32 %v90
    %v93 = vcvt.s32.f32 %v91
    %v94 = vld [vmem:[%s2] sm:$0xff]
    %v95 = vld [vmem:[%s2 + $0x8] sm:$0xff]
    %vm96 = vcmask 130048
    %v98 = vsel %vm96, %v92, 0
    %v101 = vsel %vm96, %v93, 0
    %103 = vmatpush.msra.mxu0 0.0
    %104 = vmatpush.msra.mxu0 0.0
    %105 = vmatpush.msra.mxu0 0.0
    %106 = vmatpush.msra.mxu0 0.0
    %107 = vmatpush.msra.mxu0 0.0
    %108 = vmatpush.msra.mxu0 0.0
    %109 = vmatpush.msra.mxu0 0.0
    %110 = vmatpush.msra.mxu0 0.0
    %111 = vmatpush.msra.mxu0 0.0
    %112 = vmatpush.msra.mxu0 0.0
    %113 = vmatpush.msra.mxu0 0.0
    %114 = vmatpush.msra.mxu0 0.0
    %115 = vmatpush.msra.mxu0 0.0
    %116 = vmatpush.msra.mxu0 0.0
    %117 = vmatpush.msra.mxu0 %v95
    %118 = vmatpush.msra.mxu0 %v94
    %119 = vmatmul.f32.gmra.mxu0 %v98
    %v120 = vpop.f32.mrf.mxu0
    %v121 = vadd.f32 0.0, %v120
    %122 = vmatmul.f32.gmra.mxu0 %v101
    %v123 = vpop.f32.mrf.mxu0
    %v124 = vadd.f32 0.0, %v123
    %125 = vdwg.mxu0
    %vm126 = vcmask 48128
    %v128 = vsel %vm126, %v65, 0
    %v131 = vsel %vm126, %v66, 0
    %vm133 = vcmask 1045504
    %v135 = vsel %vm133, %v67, 0
    %137 = vmatpush.msra.mxu0 0.0
    %138 = vmatpush.msra.mxu0 0.0
    %139 = vmatpush.msra.mxu0 0.0
    %140 = vmatpush.msra.mxu0 0.0
    %141 = vmatpush.msra.mxu0 0.0
    %142 = vmatpush.msra.mxu0 0.0
    %143 = vmatpush.msra.mxu0 0.0
    %144 = vmatpush.msra.mxu0 0.0
    %145 = vmatpush.msra.mxu0 0.0
    %146 = vmatpush.msra.mxu0 0.0
    %147 = vmatpush.msra.mxu0 0.0
    %148 = vmatpush.msra.mxu0 0.0
    %149 = vmatpush.msra.mxu0 0.0
    %150 = vmatpush.msra.mxu0 0.0
    %151 = vmatpush.msra.mxu0 0.0
    %152 = vmatpush.msra.mxu0 %v135
    %153 = vmatmul.f32.gmra.mxu0 %v128
    %v154 = vpop.f32.mrf.mxu0
    %v155 = vadd.f32 %v121, %v154
    %156 = vmatmul.f32.gmra.mxu0 %v131
    %v157 = vpop.f32.mrf.mxu0
    %v158 = vadd.f32 %v124, %v157
    %159 = vdwg.mxu0
    %vm160 = vcmask 261120
    %161 = vst.msk [vmem:[#allocation5] sm:$0xff] %vm160, %v155
    %162 = vst.msk [vmem:[#allocation5 + $0x8] sm:$0xff] %vm160, %v158
    // Predicated region
    $region18: #{tpu_custom_call.1} parent=1 // pred_check
      _
    $region19: #{tpu_custom_call.1} parent=1 // pred_check_branch
      %164 = sbr.rel (0) target = $region21
    $region20: #{tpu_custom_call.1} parent=1 // pred_region
      %166 = vsyncadd [#allocation4], 0
      %s167 = sshll.u32 [#allocation5], 4
      %s168 = int_to_ptr.vmem [resolvable:$true] %s167
      %s169 = sshll.u32 %s3, 4
      %s170 = int_to_ptr.hbm [resolvable:$true] %s169
      %175 = dma.vmem_to_hbm [thread:$0]  %s168, 256, %s170, [#allocation4], 128, 128, 8
    $region21: #{tpu_custom_call.1} parent=1 // pred_fallthru
      _
    // Predicated region
    $region22: #{tpu_custom_call.1} parent=1 // pred_check
      _
    $region23: #{tpu_custom_call.1} parent=1 // pred_check_branch
      %177 = sbr.rel (0) target = $region25
    $region24: #{tpu_custom_call.1} parent=1 // pred_region
      %179 = dma.done [#allocation4], 256
    $region25: #{tpu_custom_call.1} parent=1 // pred_fallthru
      _
    %180 = vsyncpa [#allocation3], 1
    %181 = vsyncpa [#allocation4], 1

</llo_original>
